<compile_context>
chip_gen: v6e
topology: v6e:2x2x1
jax: 0.10.0
libtpu: 0.0.40
codegen_flags: <defaults>
</compile_context>

<pallas_src>
import functools
import math

import jax
import jax.numpy as jnp
from jax import lax
from jax.experimental import pallas as pl
from jax.experimental.pallas import tpu as pltpu

_LANE = 128
_SUBLANE = 8
_TARGET_BLOCK_BYTES = 1 << 20      # ~1 MiB per input per pipeline buffer
_MIN_PALLAS_ELEMS = 65536          # small-input fast path threshold


def _choose_lane_width(n_elems):
    """Pick a lane width L (multiple of 128).  Prefer L such that the
    (N // L, L) view has >= 8 rows (full sublane occupancy).  Returns 0 if the
    input is too small to form even one 128-wide row (bulk empty)."""
    for lw in (1024, 512, 256, 128):
        if n_elems >= _SUBLANE * lw:
            return lw
    return _LANE if n_elems >= _LANE else 0


def _sublane_multiple(dtype):
    """Row-count multiple required for non-full blocks of this dtype
    (sub-32-bit dtypes pack along sublanes)."""
    itemsize = jnp.dtype(dtype).itemsize
    return _SUBLANE * max(1, 4 // max(1, itemsize))


def _tile_rows(rows, lane_width, dtype, target_bytes):
    """Row-tile size sized from the *padded* VMEM footprint (lane_width is
    already a multiple of 128, so cols carry no extra padding)."""
    itemsize = jnp.dtype(dtype).itemsize
    mult = _sublane_multiple(dtype)
    bytes_per_row = lane_width * max(1, itemsize)
    tr = (target_bytes // bytes_per_row) // mult * mult
    tr = max(mult, tr)
    if tr >= rows:
        return rows            # full row extent: always a legal block shape
    return tr


def _flat_split(x, lane_width):
    """Row-major flatten; return (bulk_2d, remainder_1d). bulk_2d is the first
    (N // L) * L elements viewed as (N // L, L); remainder has < L elements."""
    flat = jnp.reshape(x, (-1,))
    n = flat.shape[0]
    n_bulk = (n // lane_width) * lane_width
    bulk = jnp.reshape(flat[:n_bulk], (n_bulk // lane_width, lane_width))
    rem = flat[n_bulk:]
    return bulk, rem


def _fused_recon_kernel(nm_ref, m_ref, s_nm_ref, s_m_ref, acc_nm_ref, acc_m_ref,
                        *, steps_nm, steps_m, tr_nm, tr_m, rows_nm, rows_m):
    """Two-phase grid: the first `steps_nm` steps stream the nonmanifold bulk,
    the remaining `steps_m` steps stream the manifold bulk.  Tiny (1, L)
    accumulators; per-step sublane reduce; tail masking only where needed."""
    i = pl.program_id(0)
    last = steps_nm + steps_m - 1

    # Trace-time booleans: emit the mask path only if a phase has a ragged
    # last row-block.
    mask_nm = (rows_nm % tr_nm) != 0
    mask_m = (rows_m % tr_m) != 0

    @pl.when(i == 0)
    def _init():
        acc_nm_ref[...] = jnp.zeros_like(acc_nm_ref)
        acc_m_ref[...] = jnp.zeros_like(acc_m_ref)

    @pl.when(i < steps_nm)
    def _nm_phase():
        x = nm_ref[...].astype(jnp.float32)
        vals = jnp.abs(jnp.abs(x) - 1.0)          # | |x| - 1 |
        if mask_nm:
            @pl.when(i == steps_nm - 1)
            def _tail():
                rid = (lax.broadcasted_iota(jnp.int32, vals.shape, 0)
                       + (steps_nm - 1) * tr_nm)
                # NOTE: keep jnp.where (select is NaN-safe vs OOB garbage);
                # do NOT convert to multiply-by-mask.
                masked = jnp.where(rid < rows_nm, vals, 0.0)
                acc_nm_ref[...] += jnp.sum(masked, axis=0, keepdims=True)

            @pl.when(i < steps_nm - 1)
            def _body():
                acc_nm_ref[...] += jnp.sum(vals, axis=0, keepdims=True)
        else:
            acc_nm_ref[...] += jnp.sum(vals, axis=0, keepdims=True)

    @pl.when(i >= steps_nm)
    def _m_phase():
        x = m_ref[...].astype(jnp.float32)
        vals = jnp.abs(x)                          # |x|
        if mask_m:
            @pl.when(i == last)
            def _tail():
                rid = (lax.broadcasted_iota(jnp.int32, vals.shape, 0)
                       + (steps_m - 1) * tr_m)
                masked = jnp.where(rid < rows_m, vals, 0.0)
                acc_m_ref[...] += jnp.sum(masked, axis=0, keepdims=True)

            @pl.when(i < last)
            def _body():
                acc_m_ref[...] += jnp.sum(vals, axis=0, keepdims=True)
        else:
            acc_m_ref[...] += jnp.sum(vals, axis=0, keepdims=True)

    @pl.when(i == last)
    def _finish():
        s_nm_ref[...] = jnp.sum(acc_nm_ref[...], keepdims=True)
        s_m_ref[...] = jnp.sum(acc_m_ref[...], keepdims=True)


def _pallas_recon_sums(nm2d, m2d, target_block_bytes):
    """Return (sum(| |nm|-1 |), sum(|m|)) over the two lane-dense bulk views."""
    rows_nm, lw_nm = nm2d.shape
    rows_m, lw_m = m2d.shape

    tr_nm = _tile_rows(rows_nm, lw_nm, nm2d.dtype, target_block_bytes)
    tr_m = _tile_rows(rows_m, lw_m, m2d.dtype, target_block_bytes)
    steps_nm = pl.cdiv(rows_nm, tr_nm)
    steps_m = pl.cdiv(rows_m, tr_m)
    grid = (steps_nm + steps_m,)

    kernel = functools.partial(
        _fused_recon_kernel,
        steps_nm=steps_nm, steps_m=steps_m,
        tr_nm=tr_nm, tr_m=tr_m,
        rows_nm=rows_nm, rows_m=rows_m,
    )

    # Phase-clamped index maps: a block index only changes inside its own
    # phase, so each HBM byte is streamed exactly once (no re-fetch).
    nm_spec = pl.BlockSpec(
        (tr_nm, lw_nm), lambda i, s=steps_nm: (jnp.minimum(i, s - 1), 0))
    m_spec = pl.BlockSpec(
        (tr_m, lw_m), lambda i, s=steps_nm: (jnp.maximum(i - s, 0), 0))

    in_bytes = (rows_nm * lw_nm * jnp.dtype(nm2d.dtype).itemsize
                + rows_m * lw_m * jnp.dtype(m2d.dtype).itemsize)
    cost = pl.CostEstimate(
        flops=3 * rows_nm * lw_nm + 2 * rows_m * lw_m,
        transcendentals=0,
        bytes_accessed=in_bytes + 8,
    )

    # VMEM footprint: 2 inputs x 2 pipeline buffers x <=1 MiB padded block
    # + two tiny accumulators  =>  well under the 16 MiB scoped default (v5e)
    # and the 32 MiB default (v6e / v7x); no vmem_limit_bytes override needed.
    s_nm, s_m = pl.pallas_call(
        kernel,
        out_shape=(jax.ShapeDtypeStruct((1, 1), jnp.float32),
                   jax.ShapeDtypeStruct((1, 1), jnp.float32)),
        grid_spec=pltpu.PrefetchScalarGridSpec(
            num_scalar_prefetch=0,
            grid=grid,
            in_specs=[nm_spec, m_spec],
            out_specs=[pl.BlockSpec((1, 1), lambda i: (0, 0)),
                       pl.BlockSpec((1, 1), lambda i: (0, 0))],
            scratch_shapes=[
                pltpu.VMEM((1, lw_nm), jnp.float32),
                pltpu.VMEM((1, lw_m), jnp.float32),
            ],
        ),
        compiler_params=pltpu.CompilerParams(
            dimension_semantics=("arbitrary",),
        ),
        cost_estimate=cost,
    )(nm2d, m2d)
    return s_nm[0, 0], s_m[0, 0]


def _reference_terms(manifold_pnts_pred, nonmanifold_pnts_pred, weight):
    nm = jnp.abs(jnp.abs(jnp.asarray(nonmanifold_pnts_pred, jnp.float32)) - 1.0).mean()
    m = jnp.abs(jnp.asarray(manifold_pnts_pred, jnp.float32)).mean()
    return nm + weight * m


def sal_recon_loss(manifold_pnts_pred, nonmanifold_pnts_pred, nonmanifold_gt,
                   manifold_pnts_weight, unsigned=True, delta=None, weight=None,
                   latent_reg=None, *,
                   min_pallas_elems=_MIN_PALLAS_ELEMS,
                   target_block_bytes=_TARGET_BLOCK_BYTES):
    # `unsigned`, `delta`, `weight`, `latent_reg`, `nonmanifold_gt` are unused
    # in the reference forward pass.
    w = float(manifold_pnts_weight)

    nm = jnp.asarray(nonmanifold_pnts_pred)
    m = jnp.asarray(manifold_pnts_pred)
    n_nm = int(math.prod(nm.shape)) if nm.shape else 1
    n_m = int(math.prod(m.shape)) if m.shape else 1

    lw_nm = _choose_lane_width(n_nm)
    lw_m = _choose_lane_width(n_m)

    use_pallas = ((n_nm + n_m) >= min_pallas_elems
                  and lw_nm > 0 and lw_m > 0 and n_nm > 0 and n_m > 0)

    if not use_pallas:
        # Tiny inputs: launch overhead dominates, or bulk view would be empty.
        recon_term = _reference_terms(m, nm, w)
    else:
        nm_bulk, nm_rem = _flat_split(nm, lw_nm)
        m_bulk, m_rem = _flat_split(m, lw_m)
        s_nm, s_m = _pallas_recon_sums(nm_bulk, m_bulk, target_block_bytes)
        # < lane_width leftover elements of each input: tiny jnp reductions.
        s_nm = s_nm + jnp.sum(jnp.abs(jnp.abs(nm_rem.astype(jnp.float32)) - 1.0))
        s_m = s_m + jnp.sum(jnp.abs(m_rem.astype(jnp.float32)))
        recon_term = s_nm / n_nm + w * (s_m / n_m)

    return {
        "loss": recon_term,
        "recon_term": recon_term,
        "reg_term": jnp.zeros((1,), jnp.float32),
    }


if __name__ == "__main__":
    key = jax.random.PRNGKey(0)
    k1, k2, k3, k4, k5, k6, k7 = jax.random.split(key, 7)

    # --- Test 1: module-typical small shapes (single block per phase,
    #     lane-dense views with remainders handled in the wrapper) ---
    batch, n_m_pts, n_nm_pts = 2, 100, 300
    manifold_pnts_pred = jax.random.normal(k1, (batch, n_m_pts), jnp.float32)
    nonmanifold_pnts_pred = jax.random.normal(k2, (batch, n_nm_pts, 1), jnp.float32)
    nonmanifold_gt = jax.random.normal(k3, (batch, n_nm_pts), jnp.float32)
    manifold_pnts_weight = 0.5

    out = sal_recon_loss(
        manifold_pnts_pred, nonmanifold_pnts_pred, nonmanifold_gt,
        manifold_pnts_weight, unsigned=True,
        min_pallas_elems=0,                 # force the Pallas path for the test
    )
    jax.block_until_ready(out["loss"])
    ref = _reference_terms(manifold_pnts_pred, nonmanifold_pnts_pred,
                           manifold_pnts_weight)
    assert jnp.allclose(out["loss"], ref, atol=1e-5, rtol=1e-5), (out["loss"], ref)
    assert jnp.allclose(out["recon_term"], ref, atol=1e-5, rtol=1e-5)
    assert out["reg_term"].shape == (1,)

    # --- Test 2: multi-step grid + gated tail-row masking (rows not a
    #     multiple of the row tile) ---
    manifold2 = jax.random.normal(k4, (37, 300), jnp.float32)
    nonmanifold2 = jax.random.normal(k5, (37, 260, 1), jnp.float32)
    out2 = sal_recon_loss(
        manifold2, nonmanifold2, None, 0.3, unsigned=True,
        min_pallas_elems=0,
        target_block_bytes=16 * 1024,       # tiny blocks -> several grid steps
    )
    jax.block_until_ready(out2["loss"])
    ref2 = _reference_terms(manifold2, nonmanifold2, 0.3)
    assert jnp.allclose(out2["loss"], ref2, atol=1e-5, rtol=2e-4), (out2["loss"], ref2)

    # --- Test 3: bf16 inputs, multi-step grid (steady-state unmasked path +
    #     one masked tail block in the nonmanifold phase) ---
    manifold3 = jax.random.normal(k6, (48, 1024), jnp.float32).astype(jnp.bfloat16)
    nonmanifold3 = jax.random.normal(k7, (40, 1024, 1), jnp.float32).astype(jnp.bfloat16)
    out3 = sal_recon_loss(
        manifold3, nonmanifold3, None, 0.7, unsigned=True,
        min_pallas_elems=0,
        target_block_bytes=32 * 1024,
    )
    jax.block_until_ready(out3["loss"])
    ref3 = _reference_terms(manifold3, nonmanifold3, 0.7)
    assert jnp.allclose(out3["loss"], ref3, atol=1e-5, rtol=2e-4), (out3["loss"], ref3)

    print("KERNEL_OK")
</pallas_src>

<mosaic_0001>
module attributes {stable_mosaic.version = 11 : i64} {
  func.func @_fused_recon_kernel(%arg0: i32, %arg1: memref<4x128xf32, #tpu.memory_space<vmem>>, %arg2: memref<1x128xf32, #tpu.memory_space<vmem>>, %arg3: memref<1x1xf32, #tpu.memory_space<vmem>>, %arg4: memref<1x1xf32, #tpu.memory_space<vmem>>, %arg5: memref<1x128xf32, #tpu.memory_space<vmem>>, %arg6: memref<1x128xf32, #tpu.memory_space<vmem>>) attributes {dimension_semantics = [#tpu.dimension_semantics<arbitrary>], iteration_bounds = array<i64: 2>, scalar_prefetch = 0 : i64, scratch_operands = 2 : i64, tpu.core_type = #tpu.core_type<tc>, window_params = [{transform_indices = @transform_0, window_bounds = array<i64: 4, 128>}, {transform_indices = @transform_1, window_bounds = array<i64: 1, 128>}, {pipeline_mode = #tpu.pipeline_mode<synchronous>, transform_indices = @transform_2, window_bounds = array<i64: 1, 1>}, {pipeline_mode = #tpu.pipeline_mode<synchronous>, transform_indices = @transform_3, window_bounds = array<i64: 1, 1>}]} {
    %c0_i32 = arith.constant 0 : i32
    %0 = arith.cmpi eq, %arg0, %c0_i32 : i32
    %1 = arith.extui %0 : i1 to i32
    %c0_i32_0 = arith.constant 0 : i32
    %2 = arith.cmpi ne, %1, %c0_i32_0 : i32
    scf.if %2 {
      %cst = arith.constant 0.000000e+00 : f32
      %12 = vector.broadcast %cst : f32 to vector<1x128xf32>
      %c0 = arith.constant 0 : index
      %c0_6 = arith.constant 0 : index
      %13 = vector.load %arg5[%c0, %c0_6] : memref<1x128xf32, #tpu.memory_space<vmem>>, vector<1x128xf32>
      tpu.vector_store %arg5[%c0, %c0_6], %12 {strides = array<i32>} : memref<1x128xf32, #tpu.memory_space<vmem>>, vector<1x128xf32>,
      %cst_7 = arith.constant 0.000000e+00 : f32
      %14 = vector.broadcast %cst_7 : f32 to vector<1x128xf32>
      %c0_8 = arith.constant 0 : index
      %c0_9 = arith.constant 0 : index
      %15 = vector.load %arg6[%c0_8, %c0_9] : memref<1x128xf32, #tpu.memory_space<vmem>>, vector<1x128xf32>
      tpu.vector_store %arg6[%c0_8, %c0_9], %14 {strides = array<i32>} : memref<1x128xf32, #tpu.memory_space<vmem>>, vector<1x128xf32>,
    } else {
    }
    %c1_i32 = arith.constant 1 : i32
    %3 = arith.cmpi slt, %arg0, %c1_i32 : i32
    %4 = arith.extui %3 : i1 to i32
    %c0_i32_1 = arith.constant 0 : i32
    %5 = arith.cmpi ne, %4, %c0_i32_1 : i32
    scf.if %5 {
      %c0 = arith.constant 0 : index
      %c0_6 = arith.constant 0 : index
      %12 = vector.load %arg1[%c0, %c0_6] : memref<4x128xf32, #tpu.memory_space<vmem>>, vector<4x128xf32>
      %13 = math.absf %12 : vector<4x128xf32>
      %cst = arith.constant 1.000000e+00 : f32
      %14 = vector.broadcast %cst : f32 to vector<4x128xf32>
      %15 = arith.subf %13, %14 : vector<4x128xf32>
      %16 = math.absf %15 : vector<4x128xf32>
      %c0_7 = arith.constant 0 : index
      %c0_8 = arith.constant 0 : index
      %17 = vector.load %arg5[%c0_7, %c0_8] : memref<1x128xf32, #tpu.memory_space<vmem>>, vector<1x128xf32>
      %cst_9 = arith.constant dense<0.000000e+00> : vector<128xf32>
      %18 = vector.multi_reduction <add>, %16, %cst_9 [0] : vector<4x128xf32> to vector<128xf32>
      %19 = vector.shape_cast %18 : vector<128xf32> to vector<1x128xf32>
      %20 = arith.addf %17, %19 : vector<1x128xf32>
      %c0_10 = arith.constant 0 : index
      %c0_11 = arith.constant 0 : index
      %21 = vector.load %arg5[%c0_10, %c0_11] : memref<1x128xf32, #tpu.memory_space<vmem>>, vector<1x128xf32>
      tpu.vector_store %arg5[%c0_10, %c0_11], %20 {strides = array<i32>} : memref<1x128xf32, #tpu.memory_space<vmem>>, vector<1x128xf32>,
    } else {
    }
    %c1_i32_2 = arith.constant 1 : i32
    %6 = arith.cmpi sge, %arg0, %c1_i32_2 : i32
    %7 = arith.extui %6 : i1 to i32
    %c0_i32_3 = arith.constant 0 : i32
    %8 = arith.cmpi ne, %7, %c0_i32_3 : i32
    scf.if %8 {
      %c0 = arith.constant 0 : index
      %c0_6 = arith.constant 0 : index
      %12 = vector.load %arg2[%c0, %c0_6] : memref<1x128xf32, #tpu.memory_space<vmem>>, vector<1x128xf32>
      %13 = math.absf %12 : vector<1x128xf32>
      %c0_7 = arith.constant 0 : index
      %c0_8 = arith.constant 0 : index
      %14 = vector.load %arg6[%c0_7, %c0_8] : memref<1x128xf32, #tpu.memory_space<vmem>>, vector<1x128xf32>
      %cst = arith.constant dense<0.000000e+00> : vector<128xf32>
      %15 = vector.multi_reduction <add>, %13, %cst [0] : vector<1x128xf32> to vector<128xf32>
      %16 = vector.shape_cast %15 : vector<128xf32> to vector<1x128xf32>
      %17 = arith.addf %14, %16 : vector<1x128xf32>
      %c0_9 = arith.constant 0 : index
      %c0_10 = arith.constant 0 : index
      %18 = vector.load %arg6[%c0_9, %c0_10] : memref<1x128xf32, #tpu.memory_space<vmem>>, vector<1x128xf32>
      tpu.vector_store %arg6[%c0_9, %c0_10], %17 {strides = array<i32>} : memref<1x128xf32, #tpu.memory_space<vmem>>, vector<1x128xf32>,
    } else {
    }
    %c1_i32_4 = arith.constant 1 : i32
    %9 = arith.cmpi eq, %arg0, %c1_i32_4 : i32
    %10 = arith.extui %9 : i1 to i32
    %c0_i32_5 = arith.constant 0 : i32
    %11 = arith.cmpi ne, %10, %c0_i32_5 : i32
    scf.if %11 {
      %c0 = arith.constant 0 : index
      %c0_6 = arith.constant 0 : index
      %12 = vector.load %arg5[%c0, %c0_6] : memref<1x128xf32, #tpu.memory_space<vmem>>, vector<1x128xf32>
      %13 = vector.shape_cast %12 : vector<1x128xf32> to vector<1x1x128xf32>
      %cst = arith.constant dense<0.000000e+00> : vector<1xf32>
      %14 = vector.multi_reduction <add>, %13, %cst [1, 2] : vector<1x1x128xf32> to vector<1xf32>
      %15 = vector.shape_cast %14 : vector<1xf32> to vector<1x1x1xf32>
      %16 = vector.extract %15[0, 0, 0] : f32 from vector<1x1x1xf32>
      %17 = vector.broadcast %16 : f32 to vector<1x1xf32>
      %c0_7 = arith.constant 0 : index
      %c0_8 = arith.constant 0 : index
      %18 = vector.load %arg3[%c0_7, %c0_8] : memref<1x1xf32, #tpu.memory_space<vmem>>, vector<1x1xf32>
      tpu.vector_store %arg3[%c0_7, %c0_8], %17 {strides = array<i32>} : memref<1x1xf32, #tpu.memory_space<vmem>>, vector<1x1xf32>,
      %c0_9 = arith.constant 0 : index
      %c0_10 = arith.constant 0 : index
      %19 = vector.load %arg6[%c0_9, %c0_10] : memref<1x128xf32, #tpu.memory_space<vmem>>, vector<1x128xf32>
      %20 = vector.shape_cast %19 : vector<1x128xf32> to vector<1x1x128xf32>
      %cst_11 = arith.constant dense<0.000000e+00> : vector<1xf32>
      %21 = vector.multi_reduction <add>, %20, %cst_11 [1, 2] : vector<1x1x128xf32> to vector<1xf32>
      %22 = vector.shape_cast %21 : vector<1xf32> to vector<1x1x1xf32>
      %23 = vector.extract %22[0, 0, 0] : f32 from vector<1x1x1xf32>
      %24 = vector.broadcast %23 : f32 to vector<1x1xf32>
      %c0_12 = arith.constant 0 : index
      %c0_13 = arith.constant 0 : index
      %25 = vector.load %arg4[%c0_12, %c0_13] : memref<1x1xf32, #tpu.memory_space<vmem>>, vector<1x1xf32>
      tpu.vector_store %arg4[%c0_12, %c0_13], %24 {strides = array<i32>} : memref<1x1xf32, #tpu.memory_space<vmem>>, vector<1x1xf32>,
    } else {
    }
    return
  }
  func.func @transform_0(%arg0: i32) -> (i32, i32) {
    %c0_i32 = arith.constant 0 : i32
    %0 = arith.minsi %arg0, %c0_i32 : i32
    %c0_i32_0 = arith.constant 0 : i32
    %c0_i32_1 = arith.constant 0 : i32
    return %0, %c0_i32_0 : i32, i32
  }
  func.func @transform_1(%arg0: i32) -> (i32, i32) {
    %c1_i32 = arith.constant 1 : i32
    %0 = arith.subi %arg0, %c1_i32 : i32
    %c0_i32 = arith.constant 0 : i32
    %1 = arith.maxsi %0, %c0_i32 : i32
    %c0_i32_0 = arith.constant 0 : i32
    %c0_i32_1 = arith.constant 0 : i32
    return %1, %c0_i32_0 : i32, i32
  }
  func.func @transform_2(%arg0: i32) -> (i32, i32) {
    %c0_i32 = arith.constant 0 : i32
    %c0_i32_0 = arith.constant 0 : i32
    %c0_i32_1 = arith.constant 0 : i32
    return %c0_i32, %c0_i32_0 : i32, i32
  }
  func.func @transform_3(%arg0: i32) -> (i32, i32) {
    %c0_i32 = arith.constant 0 : i32
    %c0_i32_0 = arith.constant 0 : i32
    %c0_i32_1 = arith.constant 0 : i32
    return %c0_i32, %c0_i32_0 : i32, i32
  }
}

</mosaic_0001>

<llo_original>
// kernel: tpu_custom_call.1
$region0: #{tpu_custom_call.1}
  #allocation0 [shape = 'u32[]', space=smem, size = 0x4, offset = 0x4, fixed_abs, tag = 'smem constant byte address 0x4 - core index']
  #allocation1 [shape = 'u32[144,128]{1,0:T(1,128)}', space=vmem, size = 0x12000, scoped, tag = 'internal scratch']
  #allocation2 [shape = 'f32[1,128]{1,0:T(1,128)}', space=vmem, size = 0x200, scoped, tag = 'scratch operand']
  #allocation3 [shape = 'f32[1,128]{1,0:T(1,128)}', space=vmem, size = 0x200, scoped, tag = 'scratch operand']
  %s0 = inlined_call_operand.hbm [shape: f32[4,128], index: 0, kind: input, shape index: {}]
  %s1 = inlined_call_operand.vmem [shape: f32[1,128], index: 1, kind: input, shape index: {}]
  %s2 = inlined_call_operand.hbm [shape: f32[1,1], index: 2, kind: output, shape index: {0}]
  %s3 = inlined_call_operand.hbm [shape: f32[1,1], index: 3, kind: output, shape index: {1}]
  %4 = xla_tuple %s2, %s3
  %s5 = sld [smem:[#allocation0]]
  $region69: #{tpu_custom_call.1} parent=0
    _
  %s7 = ssub.s32 1, %s5
  %s8 = scalar_select 0, %s7, %s5
  $region1: #{tpu_custom_call.1} parent=0
    #allocation4 [shape = 'u8[4096]{0}', space=vmem, size = 0x1000, scoped, tag = 'input window, operand 0']
    #allocation5 [shape = 's32[2]{0}', space=sflag, size = 0x8, scoped, tag = 'scoped memory for tpu_custom_call.1']
    #allocation6 [shape = 's32[2]{0}', space=sflag, size = 0x8, scoped, tag = 'scoped memory for tpu_custom_call.1']
    #allocation7 [shape = 'u8[512]{0}', space=vmem, size = 0x400, scoped, tag = 'output window, operand 0, single buffered']
    #allocation8 [shape = 'u8[512]{0}', space=vmem, size = 0x400, scoped, tag = 'output window, operand 1, single buffered']
    #allocation9 [shape = 's32[1]{0}', space=sflag, size = 0x4, scoped, tag = 'scoped memory for tpu_custom_call.1']
    %9 = vsyncpa [#allocation5], 0
    %s10 = scalar_lea.sflag [#allocation5], 1
    %11 = vsyncpa %s10, 0
    %12 = vsyncpa [#allocation6], 0
    %13 = vsyncpa [#allocation9], 0
    loop: start=0, step=1, limit=4
    $region2: #{tpu_custom_call.1} parent=1 // loop_pre_header
      _
    $region3: #{tpu_custom_call.1} parent=1 // loop_header
      %s15 = sphi 0, %s19
      %p16 = scmp.ge.s32.totalorder %s15, 4
      %s29 = sphi 0, %s31
      %s32 = sphi 0, %s29
      %s33 = sphi 0, %s32
      %s49 = sphi 0, %s33
      %s61 = sphi 0, %s63
      %s64 = sphi 0, %s61
      %s65 = sphi 0, %s64
      %s81 = sphi 0, %s65
      %s85 = sphi 0, %s85
      %s87 = sphi 0, %s85
      %s88 = sphi 0, %s87
      %s102 = sphi 0, %s88
      %s106 = sphi 0, %s106
      %s108 = sphi 0, %s106
      %s109 = sphi 0, %s108
      %s123 = sphi 0, %s109
    $region4: #{tpu_custom_call.1} parent=1 // loop_header_branch
      %18 = sbr.rel (%p16) target = $region8
    $region5: #{tpu_custom_call.1} parent=1 // loop_body
      %s20 = ssub.s32 %s15, 1
      %s21 = ssub.s32 %s15, 2
      %s22 = sadd.s32 %s15, 1
      %p23 = scmp.lt.s32.totalorder %s15, 0
      %s24 = scalar_select %p23, %s15, 0
      %p25 = scmp.lt.s32.totalorder %s22, 0
      %s26 = scalar_select %p25, %s22, 0
      %s27 = ssub.s32 %s24, %s26
      %p28 = scmp.eq.s32.totalorder %s27, 0
      %s30 = sadd.s32 %s29, 1
      %s31 = scalar_select %p28, %s29, %s30
      %p34 = pneg %p28
      %p35 = scmp.eq.s32.totalorder %s15, 1
      %p36 = por %p34, %p35
      %p37 = scmp.ne.s32.totalorder %s29, %s32
      %p38 = scmp.eq.s32.totalorder %s15, 0
      %p39 = por %p37, %p38
      %p40 = scmp.ne.s32.totalorder %s29, %s32
      %p41 = scmp.eq.s32.totalorder %s20, 1
      %p42 = por %p40, %p41
      %p43 = scmp.ne.s32.totalorder %s32, %s33
      %p44 = scmp.eq.s32.totalorder %s20, 0
      %p45 = por %p43, %p44
      %p46 = scmp.ne.s32.totalorder %s32, %s33
      %p47 = scmp.eq.s32.totalorder %s21, 1
      %p48 = por %p46, %p47
      %p50 = scmp.ne.s32.totalorder %s33, %s49
      %p51 = scmp.eq.s32.totalorder %s21, 0
      %p52 = por %p50, %p51
      %s53 = ssub.s32 %s15, 1
      %p54 = scmp.gt.s32.totalorder %s53, 0
      %s55 = scalar_select %p54, %s53, 0
      %s56 = ssub.s32 %s22, 1
      %p57 = scmp.gt.s32.totalorder %s56, 0
      %s58 = scalar_select %p57, %s56, 0
      %s59 = ssub.s32 %s55, %s58
      %p60 = scmp.eq.s32.totalorder %s59, 0
      %s62 = sadd.s32 %s61, 1
      %s63 = scalar_select %p60, %s61, %s62
      %p66 = pneg %p60
      %p67 = scmp.eq.s32.totalorder %s15, 1
      %p68 = por %p66, %p67
      %p69 = scmp.ne.s32.totalorder %s61, %s64
      %p70 = scmp.eq.s32.totalorder %s15, 0
      %p71 = por %p69, %p70
      %p72 = scmp.ne.s32.totalorder %s61, %s64
      %p73 = scmp.eq.s32.totalorder %s20, 1
      %p74 = por %p72, %p73
      %p75 = scmp.ne.s32.totalorder %s64, %s65
      %p76 = scmp.eq.s32.totalorder %s20, 0
      %p77 = por %p75, %p76
      %p78 = scmp.ne.s32.totalorder %s64, %s65
      %p79 = scmp.eq.s32.totalorder %s21, 1
      %p80 = por %p78, %p79
      %p82 = scmp.ne.s32.totalorder %s65, %s81
      %p83 = scmp.eq.s32.totalorder %s21, 0
      %p84 = por %p82, %p83
      %s86 = sadd.s32 %s85, 1
      %p89 = scmp.eq.s32.totalorder %s15, 1
      %p90 = scmp.ne.s32.totalorder %s85, %s87
      %p91 = scmp.eq.s32.totalorder %s15, 0
      %p92 = por %p90, %p91
      %p93 = scmp.ne.s32.totalorder %s85, %s87
      %p94 = scmp.eq.s32.totalorder %s20, 1
      %p95 = por %p93, %p94
      %p96 = scmp.ne.s32.totalorder %s87, %s88
      %p97 = scmp.eq.s32.totalorder %s20, 0
      %p98 = por %p96, %p97
      %p99 = scmp.ne.s32.totalorder %s87, %s88
      %p100 = scmp.eq.s32.totalorder %s21, 1
      %p101 = por %p99, %p100
      %p103 = scmp.ne.s32.totalorder %s88, %s102
      %p104 = scmp.eq.s32.totalorder %s21, 0
      %p105 = por %p103, %p104
      %s107 = sadd.s32 %s106, 1
      %p110 = scmp.eq.s32.totalorder %s15, 1
      %p111 = scmp.ne.s32.totalorder %s106, %s108
      %p112 = scmp.eq.s32.totalorder %s15, 0
      %p113 = por %p111, %p112
      %p114 = scmp.ne.s32.totalorder %s106, %s108
      %p115 = scmp.eq.s32.totalorder %s20, 1
      %p116 = por %p114, %p115
      %p117 = scmp.ne.s32.totalorder %s108, %s109
      %p118 = scmp.eq.s32.totalorder %s20, 0
      %p119 = por %p117, %p118
      %p120 = scmp.ne.s32.totalorder %s108, %s109
      %p121 = scmp.eq.s32.totalorder %s21, 1
      %p122 = por %p120, %p121
      %p124 = scmp.ne.s32.totalorder %s109, %s123
      %p125 = scmp.eq.s32.totalorder %s21, 0
      %p126 = por %p124, %p125
      %p127 = scmp.le.s32.totalorder 1, %s15
      %p128 = scmp.lt.s32.totalorder %s15, 3
      %p129 = pnand %p127, %p128
      %p130 = pneg %p129
      // Predicated region
      $region9: #{tpu_custom_call.1} parent=5 // pred_check
        _
      $region10: #{tpu_custom_call.1} parent=5 // pred_check_branch
        %132 = sbr.rel (%p129) target = $region12
      $region11: #{tpu_custom_call.1} parent=5 // pred_region
        %s133 = ssub.s32 %s15, 1
      $region12: #{tpu_custom_call.1} parent=5 // pred_fallthru
        _
      %p134 = scmp.lt.s32.totalorder %s15, 2
      // Predicated region
      $region13: #{tpu_custom_call.1} parent=5 // pred_check
        %p135 = pneg %p134
      $region14: #{tpu_custom_call.1} parent=5 // pred_check_branch
        %137 = sbr.rel (%p135) target = $region16
      $region15: #{tpu_custom_call.1} parent=5 // pred_region
        // Predicated region
        $region17: #{tpu_custom_call.1} parent=15 // pred_check
          %p138 = pneg %p39
        $region18: #{tpu_custom_call.1} parent=15 // pred_check_branch
          %140 = sbr.rel (%p138) target = $region20
        $region19: #{tpu_custom_call.1} parent=15 // pred_region
          %s141 = sand.u32 %s29, 1
          %s142 = scalar_lea.sflag [#allocation5], %s141
          %s143 = sand.u32 %s29, 1
          %s144 = smul.addr %s143, 4
          %s145 = scalar_lea.vmem [#allocation4], %s144
          %p146 = scmp.lt.s32.totalorder %s15, 0
          %s147 = scalar_select %p146, %s15, 0
          %s149 = ssub.s32 64, 64
          %150 = vsyncadd %s142, %s149
          %s151 = smul.addr %s147, 64
          %s152 = scalar_lea.hbm %s0, %s151
          %s154 = sshll.u32 %s145, 4
          %s155 = int_to_ptr.vmem [resolvable:$true] %s154
          %157 = dma.hbm_to_vmem [thread:$0]  %s152, 64, %s155, %s142
        $region20: #{tpu_custom_call.1} parent=15 // pred_fallthru
          _
        // Predicated region
        $region21: #{tpu_custom_call.1} parent=15 // pred_check
          %p158 = pneg %p71
        $region22: #{tpu_custom_call.1} parent=15 // pred_check_branch
          %160 = sbr.rel (%p158) target = $region24
        $region23: #{tpu_custom_call.1} parent=15 // pred_region
          %s161 = ssub.s32 %s15, 1
          %p162 = scmp.gt.s32.totalorder %s161, 0
          %s163 = scalar_select %p162, %s161, 0
          %p164 = scmp.lt.s32.totalorder %s163, 0
          %s165 = scalar_select %p164, %s163, 0
          %s166 = scalar_lea.vmem %s1, %s165
          %s167 = ssub.s32 %s15, 1
          %p168 = scmp.gt.s32.totalorder %s167, 0
          %s169 = scalar_select %p168, %s167, 0
        $region24: #{tpu_custom_call.1} parent=15 // pred_fallthru
          _
      $region16: #{tpu_custom_call.1} parent=5 // pred_fallthru
        _
      %p170 = scmp.le.s32.totalorder 1, %s15
      %p171 = scmp.lt.s32.totalorder %s15, 3
      %p172 = pnand %p170, %p171
      %p173 = pneg %p172
      // Predicated region
      $region25: #{tpu_custom_call.1} parent=5 // pred_check
        _
      $region26: #{tpu_custom_call.1} parent=5 // pred_check_branch
        %175 = sbr.rel (%p172) target = $region28
      $region27: #{tpu_custom_call.1} parent=5 // pred_region
        %s176 = ssub.s32 %s15, 1
        %s177 = sand.u32 %s32, 1
        %s178 = scalar_lea.sflag [#allocation5], %s177
        %s179 = sand.u32 %s32, 1
        %s180 = smul.addr %s179, 4
        %s181 = scalar_lea.vmem [#allocation4], %s180
        // Predicated region
        $region29: #{tpu_custom_call.1} parent=27 // pred_check
          %p182 = pneg %p45
        $region30: #{tpu_custom_call.1} parent=27 // pred_check_branch
          %184 = sbr.rel (%p182) target = $region32
        $region31: #{tpu_custom_call.1} parent=27 // pred_region
          %185 = dma.done %s178, 64
        $region32: #{tpu_custom_call.1} parent=27 // pred_fallthru
          _
        %s186 = sand.u32 %s32, 1
        %s187 = scalar_lea.sflag [#allocation5], %s186
        %s188 = sand.u32 %s32, 1
        %s189 = smul.addr %s188, 4
        %s190 = scalar_lea.vmem [#allocation4], %s189
        %p191 = pneg %p45
        %p192 = pneg %p42
        %s193 = ssub.s32 %s20, 1
        %p194 = scmp.gt.s32.totalorder %s193, 0
        %s195 = scalar_select %p194, %s193, 0
        %p196 = scmp.lt.s32.totalorder %s195, 0
        %s197 = scalar_select %p196, %s195, 0
        %s198 = scalar_lea.vmem %s1, %s197
        %p199 = pneg %p77
        %p200 = pneg %p74
        %p201 = pneg %p98
        %p202 = pneg %p95
        %p203 = pneg %p119
        %p204 = pneg %p116
        %p205 = scmp.lt.s32.totalorder %s20, 0
        %s206 = scalar_select %p205, %s20, 0
        %s207 = ssub.s32 %s20, 1
        %p208 = scmp.gt.s32.totalorder %s207, 0
        %s209 = scalar_select %p208, %s207, 0
        %p210 = scmp.lt.s32.totalorder %s209, 0
        %s211 = scalar_select %p210, %s209, 0
        %s212 = scalar_lea.vmem %s1, %s211
        %s213 = ssub.s32 %s20, 1
        %p214 = scmp.gt.s32.totalorder %s213, 0
        %s215 = scalar_select %p214, %s213, 0
        %p216 = scmp.eq.s32.totalorder %s20, 0
        // Predicated region
        $region33: #{tpu_custom_call.1} parent=27 // pred_check
          %p217 = pneg %p216
        $region34: #{tpu_custom_call.1} parent=27 // pred_check_branch
          %219 = sbr.rel (%p217) target = $region36
        $region35: #{tpu_custom_call.1} parent=27 // pred_region
          %220 = vst [vmem:[#allocation2] sm:$0x1] 0.0
          %221 = vst [vmem:[#allocation3] sm:$0x1] 0.0
        $region36: #{tpu_custom_call.1} parent=27 // pred_fallthru
          _
        %p222 = scmp.lt.s32.totalorder %s20, 1
        // Predicated region
        $region37: #{tpu_custom_call.1} parent=27 // pred_check
          %p223 = pneg %p222
        $region38: #{tpu_custom_call.1} parent=27 // pred_check_branch
          %225 = sbr.rel (%p223) target = $region40
        $region39: #{tpu_custom_call.1} parent=27 // pred_region
          %v226 = vld [vmem:[%s181] sm:$0xf]
          %v227 = vand.u32 2147483647, %v226
          %v228 = vsub.f32 %v227, 1.0
          %v229 = vand.u32 2147483647, %v228
          %v230 = vld [vmem:[#allocation2] sm:$0x1]
          %vm231 = vcmask 1043456
          %v232 = vsel %vm231, %v229, 0.0
          %v233 = vrot.slane %v232, 4
          %v234 = vadd.f32 %v232, %v233
          %v235 = vrot.slane %v234, 2
          %v236 = vadd.f32 %v234, %v235
          %v237 = vrot.slane %v236, 1
          %v238 = vadd.f32 %v236, %v237
          %v239 = vadd.f32 %v230, %v238
          %240 = vst [vmem:[#allocation2] sm:$0x1] %v239
        $region40: #{tpu_custom_call.1} parent=27 // pred_fallthru
          _
        %p241 = scmp.ge.s32.totalorder %s20, 1
        // Predicated region
        $region41: #{tpu_custom_call.1} parent=27 // pred_check
          %p242 = pneg %p241
        $region42: #{tpu_custom_call.1} parent=27 // pred_check_branch
          %244 = sbr.rel (%p242) target = $region44
        $region43: #{tpu_custom_call.1} parent=27 // pred_region
          %v245 = vld [vmem:[%s212] sm:$0x1]
          %v246 = vand.u32 2147483647, %v245
          %v247 = vld [vmem:[#allocation3] sm:$0x1]
          %v248 = vadd.f32 %v246, 0.0
          %v249 = vadd.f32 %v247, %v248
          %250 = vst [vmem:[#allocation3] sm:$0x1] %v249
        $region44: #{tpu_custom_call.1} parent=27 // pred_fallthru
          _
        %p251 = scmp.eq.s32.totalorder %s20, 1
        // Predicated region
        $region45: #{tpu_custom_call.1} parent=27 // pred_check
          %p252 = pneg %p251
        $region46: #{tpu_custom_call.1} parent=27 // pred_check_branch
          %254 = sbr.rel (%p252) target = $region48
        $region47: #{tpu_custom_call.1} parent=27 // pred_region
          %v255 = vld [vmem:[#allocation2] sm:$0x1]
          %vm256 = vcmask 1040384
          %v257 = vsel %vm256, %v255, 0.0
          %258 = vadd.xlane.f32.xlu0 %v257
          %v259 = vpop.xlane.xlu0 %258
          %v260 = vrot.slane %v259, 4
          %v261 = vadd.f32 %v259, %v260
          %v262 = vrot.slane %v261, 2
          %v263 = vadd.f32 %v261, %v262
          %v264 = vrot.slane %v263, 1
          %v265 = vadd.f32 %v263, %v264
          %s266 = vtos %v265
          %v267 = vstv %s266
          %vm268 = vcmask 0
          %269 = vst.msk [vmem:[#allocation7] sm:$0x1] %vm268, %v267
          %v270 = vld [vmem:[#allocation3] sm:$0x1]
          %v271 = vsel %vm256, %v270, 0.0
          %272 = vadd.xlane.f32.xlu0 %v271
          %v273 = vpop.xlane.xlu0 %272
          %v274 = vrot.slane %v273, 4
          %v275 = vadd.f32 %v273, %v274
          %v276 = vrot.slane %v275, 2
          %v277 = vadd.f32 %v275, %v276
          %v278 = vrot.slane %v277, 1
          %v279 = vadd.f32 %v277, %v278
          %s280 = vtos %v279
          %v281 = vstv %s280
          %282 = vst.msk [vmem:[#allocation8] sm:$0x1] %vm268, %v281
        $region48: #{tpu_custom_call.1} parent=27 // pred_fallthru
          _
        // Predicated region
        $region49: #{tpu_custom_call.1} parent=27 // pred_check
          %p283 = pneg %p95
        $region50: #{tpu_custom_call.1} parent=27 // pred_check_branch
          %285 = sbr.rel (%p283) target = $region52
        $region51: #{tpu_custom_call.1} parent=27 // pred_region
          %s287 = ssub.s32 16, 16
          %288 = vsyncadd [#allocation6], %s287
          %s290 = sshll.u32 [#allocation7], 4
          %s291 = int_to_ptr.vmem [resolvable:$true] %s290
          %293 = dma.vmem_to_hbm [thread:$0]  %s291, 16, %s2, [#allocation6]
        $region52: #{tpu_custom_call.1} parent=27 // pred_fallthru
          _
        // Predicated region
        $region53: #{tpu_custom_call.1} parent=27 // pred_check
          %p294 = pneg %p116
        $region54: #{tpu_custom_call.1} parent=27 // pred_check_branch
          %296 = sbr.rel (%p294) target = $region56
        $region55: #{tpu_custom_call.1} parent=27 // pred_region
          %s298 = ssub.s32 16, 16
          %299 = vsyncadd [#allocation9], %s298
          %s301 = sshll.u32 [#allocation8], 4
          %s302 = int_to_ptr.vmem [resolvable:$true] %s301
          %304 = dma.vmem_to_hbm [thread:$0]  %s302, 16, %s3, [#allocation9]
        $region56: #{tpu_custom_call.1} parent=27 // pred_fallthru
          _
        // Predicated region
        $region57: #{tpu_custom_call.1} parent=27 // pred_check
          %p305 = pneg %p95
        $region58: #{tpu_custom_call.1} parent=27 // pred_check_branch
          %307 = sbr.rel (%p305) target = $region60
        $region59: #{tpu_custom_call.1} parent=27 // pred_region
          %308 = dma.done [#allocation6], 16
        $region60: #{tpu_custom_call.1} parent=27 // pred_fallthru
          _
        // Predicated region
        $region61: #{tpu_custom_call.1} parent=27 // pred_check
          %p309 = pneg %p116
        $region62: #{tpu_custom_call.1} parent=27 // pred_check_branch
          %311 = sbr.rel (%p309) target = $region64
        $region63: #{tpu_custom_call.1} parent=27 // pred_region
          %312 = dma.done [#allocation9], 16
        $region64: #{tpu_custom_call.1} parent=27 // pred_fallthru
          _
      $region28: #{tpu_custom_call.1} parent=5 // pred_fallthru
        _
      %p313 = scmp.le.s32.totalorder 2, %s15
      // Predicated region
      $region65: #{tpu_custom_call.1} parent=5 // pred_check
        %p314 = pneg %p313
      $region66: #{tpu_custom_call.1} parent=5 // pred_check_branch
        %316 = sbr.rel (%p314) target = $region68
      $region67: #{tpu_custom_call.1} parent=5 // pred_region
        %s317 = ssub.s32 %s15, 2
      $region68: #{tpu_custom_call.1} parent=5 // pred_fallthru
        _
    $region6: #{tpu_custom_call.1} parent=1 // loop_footer
      %s19 = sadd.s32 1, %s15
    $region7: #{tpu_custom_call.1} parent=1 // loop_footer_branch
      %14 = sbr.rel target = $region3
    $region8: #{tpu_custom_call.1} parent=1 // loop_exit
      _
    %318 = vsyncpa [#allocation5], 1
    %s319 = scalar_lea.sflag [#allocation5], 1
    %320 = vsyncpa %s319, 1
    %321 = vsyncpa [#allocation6], 1
    %s322 = scalar_lea.sflag [#allocation6], 1
    %323 = vsyncpa %s322, 1
    %324 = vsyncpa [#allocation9], 1

</llo_original>
